<compile_context>
chip_gen: v7x
topology: tpu7x:2x2x1
jax: 0.10.0
libtpu: 0.0.40
codegen_flags: <defaults>
</compile_context>

<pallas_src>
import functools

import jax
import jax.numpy as jnp
from jax.experimental import pallas as pl
from jax.experimental.pallas import tpu as pltpu


def _chunk_ce_kernel(x_ref, t_ref, nll_ref, cnt_ref, *, ignore_index, batch, tile_b):
    """One grid step = one batch tile, all chunks / classes at once.

    x_ref  : (num_chunk, TB, C)  logits in natural layout (any float dtype; cast here)
    t_ref  : (num_chunk, TB, 1)  int32 labels (0..C-1 or ignore_index)
    nll_ref: (num_chunk, 1)      f32 partial sum of NLL over valid samples in this tile
    cnt_ref: (num_chunk, 1)      f32 partial count of valid samples in this tile
    """
    i = pl.program_id(0)

    x = x_ref[...].astype(jnp.float32)          # (NC, TB, C)
    labels = t_ref[...]                         # (NC, TB, 1)

    # Numerically stable log-sum-exp over the class (lane) axis.
    m = jnp.max(x, axis=2, keepdims=True)                                   # (NC, TB, 1)
    lse = m + jnp.log(jnp.sum(jnp.exp(x - m), axis=2, keepdims=True))       # (NC, TB, 1)

    # Gather the target-class logit via a one-hot select along the class axis.
    cls = jax.lax.broadcasted_iota(jnp.int32, x.shape, 2)                   # (NC, TB, C)
    picked = jnp.sum(jnp.where(cls == labels, x, 0.0), axis=2, keepdims=True)

    nll = lse - picked                                                      # (NC, TB, 1)

    # Valid mask: not ignore_index, and inside the (possibly ragged) batch tail.
    pos = i * tile_b + jax.lax.broadcasted_iota(jnp.int32, labels.shape, 1)
    valid = (labels != ignore_index) & (pos < batch)                        # (NC, TB, 1)

    # Per-chunk partials for this batch tile.
    nll_ref[...] = jnp.sum(jnp.where(valid, nll, 0.0), axis=1)              # (NC, 1)
    cnt_ref[...] = jnp.sum(valid.astype(jnp.float32), axis=1)               # (NC, 1)


# Target size (bytes) for one (num_chunk, tile_b, C) f32 slab in VMEM.
_F32_SLAB_BUDGET = 2 * 1024 * 1024


def chunk_cross_entropy_loss(inputs, target, weights, *, ignore_index=-100,
                             factor=6, block_b=1024):
    """inputs: (num_chunk, B, C) float; target: (B, num_chunk) int; weights: (num_chunk,).

    Returns scalar: (sum_i weights[i] * mean-CE(chunk i)) * factor / num_chunk.
    """
    num_chunk, B, C = inputs.shape
    assert target.shape == (B, num_chunk)

    # Only the tiny target array is relaid out: (B, NC) -> (NC, B, 1) int32.
    tgt = jnp.transpose(target, (1, 0)).astype(jnp.int32)[:, :, None]

    # Pick the batch tile: as large as possible while keeping the f32 working slab
    # near _F32_SLAB_BUDGET; sublane axis must be a multiple of 8 unless full-extent.
    row_bytes = max(1, num_chunk * C * 4)
    cap_rows = max(8, ((_F32_SLAB_BUDGET // row_bytes) // 8) * 8)
    tb_cap = max(8, (min(int(block_b), cap_rows) // 8) * 8)
    if B <= tb_cap:
        tb = B                      # full batch resident -> single grid step
        num_tiles = 1
    else:
        tb = tb_cap                 # multiple of 8
        num_tiles = pl.cdiv(B, tb)

    kernel = functools.partial(
        _chunk_ce_kernel,
        ignore_index=int(ignore_index), batch=int(B), tile_b=int(tb))

    nll_part, cnt_part = pl.pallas_call(
        kernel,
        out_shape=(jax.ShapeDtypeStruct((num_tiles, num_chunk, 1), jnp.float32),
                   jax.ShapeDtypeStruct((num_tiles, num_chunk, 1), jnp.float32)),
        grid_spec=pltpu.PrefetchScalarGridSpec(
            num_scalar_prefetch=0,
            grid=(num_tiles,),
            in_specs=[
                pl.BlockSpec((num_chunk, tb, C), lambda i: (0, i, 0)),
                pl.BlockSpec((num_chunk, tb, 1), lambda i: (0, i, 0)),
            ],
            out_specs=[
                pl.BlockSpec((None, num_chunk, 1), lambda i: (i, 0, 0)),
                pl.BlockSpec((None, num_chunk, 1), lambda i: (i, 0, 0)),
            ],
        ),
        compiler_params=pltpu.CompilerParams(
            dimension_semantics=("parallel",),   # independent partial sums per batch tile
            vmem_limit_bytes=32 * 1024 * 1024,
        ),
    )(inputs, tgt)

    # Tiny wrapper-side finish over num_chunk values: reduce tiles, per-chunk mean,
    # per-chunk weight, then * factor / num_chunk (static Python scale).
    nll_sum = jnp.sum(nll_part[:, :, 0], axis=0)                 # (num_chunk,)
    cnt = jnp.sum(cnt_part[:, :, 0], axis=0)                     # (num_chunk,)
    chunk_mean = nll_sum / cnt   # NaN if a chunk has zero valid targets (matches PyTorch)
    w = jnp.asarray(weights, dtype=jnp.float32)
    return jnp.sum(w * chunk_mean) * (float(factor) / float(num_chunk))


def _reference_loss(inputs, target, weights, *, ignore_index=-100, factor=6):
    """Pure-JAX replica of the PyTorch forward, for verification."""
    num_chunk = inputs.shape[0]
    w = jnp.asarray(weights, dtype=jnp.float32)
    loss = jnp.float32(0.0)
    for i in range(num_chunk):
        logits = inputs[i].astype(jnp.float32)                   # (B, C)
        labels = target[:, i]                                    # (B,)
        logp = jax.nn.log_softmax(logits, axis=-1)
        valid = labels != ignore_index
        safe = jnp.where(valid, labels, 0)
        nll = -jnp.take_along_axis(logp, safe[:, None], axis=-1)[:, 0]
        ce = jnp.sum(jnp.where(valid, nll, 0.0)) / jnp.sum(valid)
        loss = loss + w[i] * ce
    return loss * float(factor) / float(num_chunk)


if __name__ == "__main__":
    key = jax.random.PRNGKey(0)
    k_x, k_lab, k_ign, k_w, k_x2, k_lab2, k_ign2 = jax.random.split(key, 7)

    num_chunk, B, C = 4, 16, 8
    ignore_index = -100
    factor = 6

    # Logits: (num_chunk, B, C) as input[i] -> (B, C).  Targets: (B, num_chunk).
    x = jax.random.normal(k_x, (num_chunk, B, C), dtype=jnp.float32)
    labels = jax.random.randint(k_lab, (B, num_chunk), 0, C, dtype=jnp.int32)
    ign = jax.random.uniform(k_ign, (B, num_chunk)) < 0.2
    ign = ign.at[0].set(False)   # keep >=1 valid target per chunk (avoid NaN means)
    target = jnp.where(ign, jnp.int32(ignore_index), labels)
    weights = jax.random.uniform(k_w, (num_chunk,), minval=0.5, maxval=1.5, dtype=jnp.float32)

    loss = jax.block_until_ready(
        chunk_cross_entropy_loss(x, target, weights, ignore_index=ignore_index, factor=factor))
    ref = jax.block_until_ready(
        _reference_loss(x, target, weights, ignore_index=ignore_index, factor=factor))
    assert jnp.allclose(loss, ref, rtol=1e-4, atol=1e-5), (loss, ref)

    # Second case: exercise the batch-tiled path with a ragged tail (B not multiple of tile).
    B2 = 300
    x2 = jax.random.normal(k_x2, (num_chunk, B2, C), dtype=jnp.float32)
    labels2 = jax.random.randint(k_lab2, (B2, num_chunk), 0, C, dtype=jnp.int32)
    ign2 = jax.random.uniform(k_ign2, (B2, num_chunk)) < 0.2
    ign2 = ign2.at[0].set(False)
    target2 = jnp.where(ign2, jnp.int32(ignore_index), labels2)

    loss2 = jax.block_until_ready(
        chunk_cross_entropy_loss(x2, target2, weights, ignore_index=ignore_index,
                                 factor=factor, block_b=128))
    ref2 = jax.block_until_ready(
        _reference_loss(x2, target2, weights, ignore_index=ignore_index, factor=factor))
    assert jnp.allclose(loss2, ref2, rtol=1e-4, atol=1e-5), (loss2, ref2)

    print("KERNEL_OK")
</pallas_src>

<mosaic_0001>
module attributes {stable_mosaic.version = 11 : i64} {
  func.func @_chunk_ce_kernel(%arg0: i32, %arg1: memref<4x16x8xf32, #tpu.memory_space<vmem>>, %arg2: memref<4x16x1xi32, #tpu.memory_space<vmem>>, %arg3: memref<1x4x1xf32, #tpu.memory_space<vmem>>, %arg4: memref<1x4x1xf32, #tpu.memory_space<vmem>>) attributes {dimension_semantics = [#tpu.dimension_semantics<parallel>], iteration_bounds = array<i64: 1>, scalar_prefetch = 0 : i64, scratch_operands = 0 : i64, tpu.core_type = #tpu.core_type<tc>, window_params = [{transform_indices = @transform_0, window_bounds = array<i64: 4, 16, 8>}, {transform_indices = @transform_1, window_bounds = array<i64: 4, 16, 1>}, {transform_indices = @transform_2, window_bounds = array<i64: 1, 4, 1>}, {transform_indices = @transform_3, window_bounds = array<i64: 1, 4, 1>}]} {
    %c0 = arith.constant 0 : index
    %c0_0 = arith.constant 0 : index
    %c0_1 = arith.constant 0 : index
    %0 = vector.load %arg1[%c0, %c0_0, %c0_1] : memref<4x16x8xf32, #tpu.memory_space<vmem>>, vector<4x16x8xf32>
    %c0_2 = arith.constant 0 : index
    %c0_3 = arith.constant 0 : index
    %c0_4 = arith.constant 0 : index
    %1 = vector.load %arg2[%c0_2, %c0_3, %c0_4] : memref<4x16x1xi32, #tpu.memory_space<vmem>>, vector<4x16x1xi32>
    %cst = arith.constant dense<0xFF800000> : vector<4x16xf32>
    %2 = vector.multi_reduction <maximumf>, %0, %cst [2] : vector<4x16x8xf32> to vector<4x16xf32>
    %3 = vector.shape_cast %2 : vector<4x16xf32> to vector<4x16x1xf32>
    %4 = vector.broadcast %3 : vector<4x16x1xf32> to vector<4x16x8xf32>
    %5 = arith.subf %0, %4 : vector<4x16x8xf32>
    %6 = math.exp %5 : vector<4x16x8xf32>
    %cst_5 = arith.constant dense<0.000000e+00> : vector<4x16xf32>
    %7 = vector.multi_reduction <add>, %6, %cst_5 [2] : vector<4x16x8xf32> to vector<4x16xf32>
    %8 = vector.shape_cast %7 : vector<4x16xf32> to vector<4x16x1xf32>
    %9 = math.log %8 : vector<4x16x1xf32>
    %10 = arith.addf %3, %9 : vector<4x16x1xf32>
    %11 = tpu.iota {dimensions = array<i32: 2>} : vector<4x16x8xi32>
    %12 = vector.broadcast %1 : vector<4x16x1xi32> to vector<4x16x8xi32>
    %13 = arith.cmpi eq, %11, %12 : vector<4x16x8xi32>
    %cst_6 = arith.constant 0.000000e+00 : f32
    %14 = vector.broadcast %cst_6 : f32 to vector<4x16x8xf32>
    %15 = arith.select %13, %0, %14 : vector<4x16x8xi1>, vector<4x16x8xf32>
    %cst_7 = arith.constant dense<0.000000e+00> : vector<4x16xf32>
    %16 = vector.multi_reduction <add>, %15, %cst_7 [2] : vector<4x16x8xf32> to vector<4x16xf32>
    %17 = vector.shape_cast %16 : vector<4x16xf32> to vector<4x16x1xf32>
    %18 = arith.subf %10, %17 : vector<4x16x1xf32>
    %c16_i32 = arith.constant 16 : i32
    %19 = arith.muli %arg0, %c16_i32 : i32
    %20 = tpu.iota {dimensions = array<i32: 1>} : vector<4x16x1xi32>
    %21 = vector.broadcast %19 : i32 to vector<4x16x1xi32>
    %22 = arith.addi %21, %20 : vector<4x16x1xi32>
    %c-100_i32 = arith.constant -100 : i32
    %23 = vector.broadcast %c-100_i32 : i32 to vector<4x16x1xi32>
    %24 = arith.cmpi ne, %1, %23 : vector<4x16x1xi32>
    %c16_i32_8 = arith.constant 16 : i32
    %25 = vector.broadcast %c16_i32_8 : i32 to vector<4x16x1xi32>
    %26 = arith.cmpi slt, %22, %25 : vector<4x16x1xi32>
    %27 = arith.andi %24, %26 : vector<4x16x1xi1>
    %cst_9 = arith.constant 0.000000e+00 : f32
    %28 = vector.broadcast %cst_9 : f32 to vector<4x16x1xf32>
    %29 = arith.select %27, %18, %28 : vector<4x16x1xi1>, vector<4x16x1xf32>
    %cst_10 = arith.constant dense<0.000000e+00> : vector<4x1xf32>
    %30 = vector.multi_reduction <add>, %29, %cst_10 [1] : vector<4x16x1xf32> to vector<4x1xf32>
    %c0_11 = arith.constant 0 : index
    %c0_12 = arith.constant 0 : index
    %c0_13 = arith.constant 0 : index
    %31 = vector.load %arg3[%c0_11, %c0_12, %c0_13] : memref<1x4x1xf32, #tpu.memory_space<vmem>>, vector<1x4x1xf32>
    %32 = vector.shape_cast %31 : vector<1x4x1xf32> to vector<4x1xf32>
    %33 = vector.shape_cast %30 : vector<4x1xf32> to vector<1x4x1xf32>
    tpu.vector_store %arg3[%c0_11, %c0_12, %c0_13], %33 {strides = array<i32>} : memref<1x4x1xf32, #tpu.memory_space<vmem>>, vector<1x4x1xf32>,
    %34 = arith.extui %27 : vector<4x16x1xi1> to vector<4x16x1xi32>
    %35 = arith.sitofp %34 : vector<4x16x1xi32> to vector<4x16x1xf32>
    %cst_14 = arith.constant dense<0.000000e+00> : vector<4x1xf32>
    %36 = vector.multi_reduction <add>, %35, %cst_14 [1] : vector<4x16x1xf32> to vector<4x1xf32>
    %c0_15 = arith.constant 0 : index
    %c0_16 = arith.constant 0 : index
    %c0_17 = arith.constant 0 : index
    %37 = vector.load %arg4[%c0_15, %c0_16, %c0_17] : memref<1x4x1xf32, #tpu.memory_space<vmem>>, vector<1x4x1xf32>
    %38 = vector.shape_cast %37 : vector<1x4x1xf32> to vector<4x1xf32>
    %39 = vector.shape_cast %36 : vector<4x1xf32> to vector<1x4x1xf32>
    tpu.vector_store %arg4[%c0_15, %c0_16, %c0_17], %39 {strides = array<i32>} : memref<1x4x1xf32, #tpu.memory_space<vmem>>, vector<1x4x1xf32>,
    return
  }
  func.func @transform_0(%arg0: i32) -> (i32, i32, i32) {
    %c0_i32 = arith.constant 0 : i32
    %c0_i32_0 = arith.constant 0 : i32
    %c0_i32_1 = arith.constant 0 : i32
    return %c0_i32, %arg0, %c0_i32_0 : i32, i32, i32
  }
  func.func @transform_1(%arg0: i32) -> (i32, i32, i32) {
    %c0_i32 = arith.constant 0 : i32
    %c0_i32_0 = arith.constant 0 : i32
    %c0_i32_1 = arith.constant 0 : i32
    return %c0_i32, %arg0, %c0_i32_0 : i32, i32, i32
  }
  func.func @transform_2(%arg0: i32) -> (i32, i32, i32) {
    %c0_i32 = arith.constant 0 : i32
    %c0_i32_0 = arith.constant 0 : i32
    %c0_i32_1 = arith.constant 0 : i32
    return %arg0, %c0_i32, %c0_i32_0 : i32, i32, i32
  }
  func.func @transform_3(%arg0: i32) -> (i32, i32, i32) {
    %c0_i32 = arith.constant 0 : i32
    %c0_i32_0 = arith.constant 0 : i32
    %c0_i32_1 = arith.constant 0 : i32
    return %arg0, %c0_i32, %c0_i32_0 : i32, i32, i32
  }
}

</mosaic_0001>

<llo_original>
// kernel: tpu_custom_call.1
$region0: #{tpu_custom_call.1}
  #allocation0 [shape = 'u32[]', space=smem, size = 0x4, offset = 0x4, fixed_abs, tag = 'smem constant byte address 0x4 - core index']
  #allocation1 [shape = 'u32[144,128]{1,0:T(1,128)}', space=vmem, size = 0x12000, scoped, tag = 'internal scratch']
  %s0 = inlined_call_operand.vmem [shape: f32[4,16,8], index: 0, kind: input, shape index: {}]
  %s1 = inlined_call_operand.vmem [shape: s32[4,16,1], index: 1, kind: input, shape index: {}]
  %s2 = inlined_call_operand.vmem [shape: f32[1,4,1], index: 2, kind: output, shape index: {0}]
  %s3 = inlined_call_operand.vmem [shape: f32[1,4,1], index: 3, kind: output, shape index: {1}]
  %4 = xla_tuple %s2, %s3
  %s5 = sld [smem:[#allocation0]]
  $region26: #{tpu_custom_call.1} parent=0
    _
  %s7 = ssub.s32 1, %s5
  %s8 = scalar_select 0, %s7, %s5
  // Predicated region
  $region2: #{tpu_custom_call.1} parent=0 // pred_check
    _
  $region3: #{tpu_custom_call.1} parent=0 // pred_check_branch
    %10 = sbr.rel (0) target = $region5
  $region4: #{tpu_custom_call.1} parent=0 // pred_region
    _
  $region5: #{tpu_custom_call.1} parent=0 // pred_fallthru
    _
  // Predicated region
  $region6: #{tpu_custom_call.1} parent=0 // pred_check
    _
  $region7: #{tpu_custom_call.1} parent=0 // pred_check_branch
    %12 = sbr.rel (0) target = $region9
  $region8: #{tpu_custom_call.1} parent=0 // pred_region
    _
  $region9: #{tpu_custom_call.1} parent=0 // pred_fallthru
    _
  %v13 = vld [vmem:[%s0] sm:$0xff]
  %v14 = vld [vmem:[%s0 + $0x8] sm:$0xff]
  %v15 = vld [vmem:[%s0 + $0x10] sm:$0xff]
  %v16 = vld [vmem:[%s0 + $0x18] sm:$0xff]
  %v17 = vld [vmem:[%s0 + $0x20] sm:$0xff]
  %v18 = vld [vmem:[%s0 + $0x28] sm:$0xff]
  %v19 = vld [vmem:[%s0 + $0x30] sm:$0xff]
  %v20 = vld [vmem:[%s0 + $0x38] sm:$0xff]
  %v21 = vld [vmem:[%s1] sm:$0xff]
  %v22 = vld [vmem:[%s1 + $0x8] sm:$0xff]
  %v23 = vld [vmem:[%s1 + $0x10] sm:$0xff]
  %v24 = vld [vmem:[%s1 + $0x18] sm:$0xff]
  %v25 = vld [vmem:[%s1 + $0x20] sm:$0xff]
  %v26 = vld [vmem:[%s1 + $0x28] sm:$0xff]
  %v27 = vld [vmem:[%s1 + $0x30] sm:$0xff]
  %v28 = vld [vmem:[%s1 + $0x38] sm:$0xff]
  %vm29 = vcmask 64512
  %v30 = vsel %vm29, %v13, -inf
  %31 = vmax.xlane.f32.xlu0 %v30
  %v32 = vpop.xlane.xlu0 %31
  %v33 = vsel %vm29, %v14, -inf
  %34 = vmax.xlane.f32.xlu0 %v33
  %v35 = vpop.xlane.xlu0 %34
  %v36 = vsel %vm29, %v15, -inf
  %37 = vmax.xlane.f32.xlu0 %v36
  %v38 = vpop.xlane.xlu0 %37
  %v39 = vsel %vm29, %v16, -inf
  %40 = vmax.xlane.f32.xlu0 %v39
  %v41 = vpop.xlane.xlu0 %40
  %v42 = vsel %vm29, %v17, -inf
  %43 = vmax.xlane.f32.xlu0 %v42
  %v44 = vpop.xlane.xlu0 %43
  %v45 = vsel %vm29, %v18, -inf
  %46 = vmax.xlane.f32.xlu0 %v45
  %v47 = vpop.xlane.xlu0 %46
  %v48 = vsel %vm29, %v19, -inf
  %49 = vmax.xlane.f32.xlu0 %v48
  %v50 = vpop.xlane.xlu0 %49
  %v51 = vsel %vm29, %v20, -inf
  %52 = vmax.xlane.f32.xlu0 %v51
  %v53 = vpop.xlane.xlu0 %52
  %v54 = vsub.f32 %v13, %v32
  %v55 = vsub.f32 %v14, %v35
  %v56 = vsub.f32 %v15, %v38
  %v57 = vsub.f32 %v16, %v41
  %v58 = vsub.f32 %v17, %v44
  %v59 = vsub.f32 %v18, %v47
  %v60 = vsub.f32 %v19, %v50
  %v61 = vsub.f32 %v20, %v53
  %v62 = vmul.f32 %v54, 1.442695
  %v63 = vpow.pop %v62
  %v64 = vmul.f32 %v55, 1.442695
  %v65 = vpow.pop %v64
  %v66 = vmul.f32 %v56, 1.442695
  %v67 = vpow.pop %v66
  %v68 = vmul.f32 %v57, 1.442695
  %v69 = vpow.pop %v68
  %v70 = vmul.f32 %v58, 1.442695
  %v71 = vpow.pop %v70
  %v72 = vmul.f32 %v59, 1.442695
  %v73 = vpow.pop %v72
  %v74 = vmul.f32 %v60, 1.442695
  %v75 = vpow.pop %v74
  %v76 = vmul.f32 %v61, 1.442695
  %v77 = vpow.pop %v76
  %v78 = vsel %vm29, %v63, 0.0
  %79 = vadd.xlane.f32.xlu0 %v78
  %v80 = vpop.xlane.xlu0 %79
  %v81 = vsel %vm29, %v65, 0.0
  %82 = vadd.xlane.f32.xlu0 %v81
  %v83 = vpop.xlane.xlu0 %82
  %v84 = vsel %vm29, %v67, 0.0
  %85 = vadd.xlane.f32.xlu0 %v84
  %v86 = vpop.xlane.xlu0 %85
  %v87 = vsel %vm29, %v69, 0.0
  %88 = vadd.xlane.f32.xlu0 %v87
  %v89 = vpop.xlane.xlu0 %88
  %v90 = vsel %vm29, %v71, 0.0
  %91 = vadd.xlane.f32.xlu0 %v90
  %v92 = vpop.xlane.xlu0 %91
  %v93 = vsel %vm29, %v73, 0.0
  %94 = vadd.xlane.f32.xlu0 %v93
  %v95 = vpop.xlane.xlu0 %94
  %v96 = vsel %vm29, %v75, 0.0
  %97 = vadd.xlane.f32.xlu0 %v96
  %v98 = vpop.xlane.xlu0 %97
  %v99 = vsel %vm29, %v77, 0.0
  %100 = vadd.xlane.f32.xlu0 %v99
  %v101 = vpop.xlane.xlu0 %100
  %v102 = vlog2.pop %v80
  %v103 = vmul.f32 %v102, 0.6931472
  %v104 = vlog2.pop %v83
  %v105 = vmul.f32 %v104, 0.6931472
  %v106 = vlog2.pop %v86
  %v107 = vmul.f32 %v106, 0.6931472
  %v108 = vlog2.pop %v89
  %v109 = vmul.f32 %v108, 0.6931472
  %v110 = vlog2.pop %v92
  %v111 = vmul.f32 %v110, 0.6931472
  %v112 = vlog2.pop %v95
  %v113 = vmul.f32 %v112, 0.6931472
  %v114 = vlog2.pop %v98
  %v115 = vmul.f32 %v114, 0.6931472
  %v116 = vlog2.pop %v101
  %v117 = vmul.f32 %v116, 0.6931472
  %v118 = vadd.f32 %v32, %v103
  %v119 = vadd.f32 %v35, %v105
  %v120 = vadd.f32 %v38, %v107
  %v121 = vadd.f32 %v41, %v109
  %v122 = vadd.f32 %v44, %v111
  %v123 = vadd.f32 %v47, %v113
  %v124 = vadd.f32 %v50, %v115
  %v125 = vadd.f32 %v53, %v117
  %v126 = vlaneseq
  %v127 = vand.u32 %v126, 127
  %128 = vset.pattern.permute.xlu0 0
  %129 = vperm.xlu0 %128, %v21
  %v130 = vpop.permute.xlu0 %129
  %131 = vset.pattern.permute.xlu0 0
  %132 = vperm.xlu0 %131, %v22
  %v133 = vpop.permute.xlu0 %132
  %134 = vset.pattern.permute.xlu0 0
  %135 = vperm.xlu0 %134, %v23
  %v136 = vpop.permute.xlu0 %135
  %137 = vset.pattern.permute.xlu0 0
  %138 = vperm.xlu0 %137, %v24
  %v139 = vpop.permute.xlu0 %138
  %140 = vset.pattern.permute.xlu0 0
  %141 = vperm.xlu0 %140, %v25
  %v142 = vpop.permute.xlu0 %141
  %143 = vset.pattern.permute.xlu0 0
  %144 = vperm.xlu0 %143, %v26
  %v145 = vpop.permute.xlu0 %144
  %146 = vset.pattern.permute.xlu0 0
  %147 = vperm.xlu0 %146, %v27
  %v148 = vpop.permute.xlu0 %147
  %149 = vset.pattern.permute.xlu0 0
  %150 = vperm.xlu0 %149, %v28
  %v151 = vpop.permute.xlu0 %150
  %vm152 = vcmp.eq.s32.totalorder %v127, %v130
  %vm153 = vcmp.eq.s32.totalorder %v127, %v133
  %vm154 = vcmp.eq.s32.totalorder %v127, %v136
  %vm155 = vcmp.eq.s32.totalorder %v127, %v139
  %vm156 = vcmp.eq.s32.totalorder %v127, %v142
  %vm157 = vcmp.eq.s32.totalorder %v127, %v145
  %vm158 = vcmp.eq.s32.totalorder %v127, %v148
  %vm159 = vcmp.eq.s32.totalorder %v127, %v151
  %v160 = vsel %vm152, %v13, 0.0
  %v161 = vsel %vm153, %v14, 0.0
  %v162 = vsel %vm154, %v15, 0.0
  %v163 = vsel %vm155, %v16, 0.0
  %v164 = vsel %vm156, %v17, 0.0
  %v165 = vsel %vm157, %v18, 0.0
  %v166 = vsel %vm158, %v19, 0.0
  %v167 = vsel %vm159, %v20, 0.0
  %v168 = vsel %vm29, %v160, 0.0
  %169 = vadd.xlane.f32.xlu0 %v168
  %v170 = vpop.xlane.xlu0 %169
  %v171 = vsel %vm29, %v161, 0.0
  %172 = vadd.xlane.f32.xlu0 %v171
  %v173 = vpop.xlane.xlu0 %172
  %v174 = vsel %vm29, %v162, 0.0
  %175 = vadd.xlane.f32.xlu0 %v174
  %v176 = vpop.xlane.xlu0 %175
  %v177 = vsel %vm29, %v163, 0.0
  %178 = vadd.xlane.f32.xlu0 %v177
  %v179 = vpop.xlane.xlu0 %178
  %v180 = vsel %vm29, %v164, 0.0
  %181 = vadd.xlane.f32.xlu0 %v180
  %v182 = vpop.xlane.xlu0 %181
  %v183 = vsel %vm29, %v165, 0.0
  %184 = vadd.xlane.f32.xlu0 %v183
  %v185 = vpop.xlane.xlu0 %184
  %v186 = vsel %vm29, %v166, 0.0
  %187 = vadd.xlane.f32.xlu0 %v186
  %v188 = vpop.xlane.xlu0 %187
  %v189 = vsel %vm29, %v167, 0.0
  %190 = vadd.xlane.f32.xlu0 %v189
  %v191 = vpop.xlane.xlu0 %190
  %v192 = vsub.f32 %v118, %v170
  %v193 = vsub.f32 %v119, %v173
  %v194 = vsub.f32 %v120, %v176
  %v195 = vsub.f32 %v121, %v179
  %v196 = vsub.f32 %v122, %v182
  %v197 = vsub.f32 %v123, %v185
  %v198 = vsub.f32 %v124, %v188
  %v199 = vsub.f32 %v125, %v191
  %s200 = smul.u32 0, 16
  %v201 = vlaneseq
  %v202 = vshrl.u32 %v201, 7
  %v203 = vadd.s32 %v202, 8
  %v204 = vstv %s200
  %v205 = vadd.s32 %v204, %v202
  %v206 = vadd.s32 %v204, %v203
  %vm207 = vcmp.ne.s32.totalorder %v21, 4294967196
  %vm208 = vcmp.ne.s32.totalorder %v22, 4294967196
  %vm209 = vcmp.ne.s32.totalorder %v23, 4294967196
  %vm210 = vcmp.ne.s32.totalorder %v24, 4294967196
  %vm211 = vcmp.ne.s32.totalorder %v25, 4294967196
  %vm212 = vcmp.ne.s32.totalorder %v26, 4294967196
  %vm213 = vcmp.ne.s32.totalorder %v27, 4294967196
  %vm214 = vcmp.ne.s32.totalorder %v28, 4294967196
  %vm215 = vcmp.lt.s32.totalorder %v205, 16
  %vm216 = vcmp.lt.s32.totalorder %v206, 16
  %vm217 = vmand %vm207, %vm215
  %vm218 = vmand %vm208, %vm216
  %vm219 = vmand %vm209, %vm215
  %vm220 = vmand %vm210, %vm216
  %vm221 = vmand %vm211, %vm215
  %vm222 = vmand %vm212, %vm216
  %vm223 = vmand %vm213, %vm215
  %vm224 = vmand %vm214, %vm216
  %v225 = vsel %vm217, %v192, 0.0
  %v226 = vsel %vm218, %v193, 0.0
  %v227 = vsel %vm219, %v194, 0.0
  %v228 = vsel %vm220, %v195, 0.0
  %v229 = vsel %vm221, %v196, 0.0
  %v230 = vsel %vm222, %v197, 0.0
  %v231 = vsel %vm223, %v198, 0.0
  %v232 = vsel %vm224, %v199, 0.0
  %vm233 = vcmask 7168
  %v234 = vsel %vm233, %v225, 0.0
  %v235 = vsel %vm233, %v226, 0.0
  %v236 = vadd.f32 %v234, %v235
  %v237 = vrot.slane %v236, 4
  %v238 = vadd.f32 %v236, %v237
  %v239 = vrot.slane %v238, 2
  %v240 = vadd.f32 %v238, %v239
  %v241 = vrot.slane %v240, 1
  %v242 = vadd.f32 %v240, %v241
  %v243 = vsel %vm233, %v227, 0.0
  %v244 = vsel %vm233, %v228, 0.0
  %v245 = vadd.f32 %v243, %v244
  %v246 = vrot.slane %v245, 4
  %v247 = vadd.f32 %v245, %v246
  %v248 = vrot.slane %v247, 2
  %v249 = vadd.f32 %v247, %v248
  %v250 = vrot.slane %v249, 1
  %v251 = vadd.f32 %v249, %v250
  %v252 = vsel %vm233, %v229, 0.0
  %v253 = vsel %vm233, %v230, 0.0
  %v254 = vadd.f32 %v252, %v253
  %v255 = vrot.slane %v254, 4
  %v256 = vadd.f32 %v254, %v255
  %v257 = vrot.slane %v256, 2
  %v258 = vadd.f32 %v256, %v257
  %v259 = vrot.slane %v258, 1
  %v260 = vadd.f32 %v258, %v259
  %v261 = vsel %vm233, %v231, 0.0
  %v262 = vsel %vm233, %v232, 0.0
  %v263 = vadd.f32 %v261, %v262
  %v264 = vrot.slane %v263, 4
  %v265 = vadd.f32 %v263, %v264
  %v266 = vrot.slane %v265, 2
  %v267 = vadd.f32 %v265, %v266
  %v268 = vrot.slane %v267, 1
  %v269 = vadd.f32 %v267, %v268
  %vm274 = vcmask 1041409
  %v275 = vsel %vm274, %v251, %v242
  %vm276 = vcmask 1042434
  %v277 = vsel %vm276, %v260, %v275
  %vm278 = vcmask 1043459
  %v279 = vsel %vm278, %v269, %v277
  %vm281 = vcmask 3072
  %282 = vst.msk [vmem:[%s2] sm:$0xf] %vm281, %v279
  %v283 = vsel %vm217, 1, 0
  %v284 = vsel %vm218, 1, 0
  %v285 = vsel %vm219, 1, 0
  %v286 = vsel %vm220, 1, 0
  %v287 = vsel %vm221, 1, 0
  %v288 = vsel %vm222, 1, 0
  %v289 = vsel %vm223, 1, 0
  %v290 = vsel %vm224, 1, 0
  %v291 = vcvt.s32.f32 %v283
  %v292 = vcvt.s32.f32 %v284
  %v293 = vcvt.s32.f32 %v285
  %v294 = vcvt.s32.f32 %v286
  %v295 = vcvt.s32.f32 %v287
  %v296 = vcvt.s32.f32 %v288
  %v297 = vcvt.s32.f32 %v289
  %v298 = vcvt.s32.f32 %v290
  %v299 = vsel %vm233, %v291, 0.0
  %v300 = vsel %vm233, %v292, 0.0
  %v301 = vadd.f32 %v299, %v300
  %v302 = vrot.slane %v301, 4
  %v303 = vadd.f32 %v301, %v302
  %v304 = vrot.slane %v303, 2
  %v305 = vadd.f32 %v303, %v304
  %v306 = vrot.slane %v305, 1
  %v307 = vadd.f32 %v305, %v306
  %v308 = vsel %vm233, %v293, 0.0
  %v309 = vsel %vm233, %v294, 0.0
  %v310 = vadd.f32 %v308, %v309
  %v311 = vrot.slane %v310, 4
  %v312 = vadd.f32 %v310, %v311
  %v313 = vrot.slane %v312, 2
  %v314 = vadd.f32 %v312, %v313
  %v315 = vrot.slane %v314, 1
  %v316 = vadd.f32 %v314, %v315
  %v317 = vsel %vm233, %v295, 0.0
  %v318 = vsel %vm233, %v296, 0.0
  %v319 = vadd.f32 %v317, %v318
  %v320 = vrot.slane %v319, 4
  %v321 = vadd.f32 %v319, %v320
  %v322 = vrot.slane %v321, 2
  %v323 = vadd.f32 %v321, %v322
  %v324 = vrot.slane %v323, 1
  %v325 = vadd.f32 %v323, %v324
  %v326 = vsel %vm233, %v297, 0.0
  %v327 = vsel %vm233, %v298, 0.0
  %v328 = vadd.f32 %v326, %v327
  %v329 = vrot.slane %v328, 4
  %v330 = vadd.f32 %v328, %v329
  %v331 = vrot.slane %v330, 2
  %v332 = vadd.f32 %v330, %v331
  %v333 = vrot.slane %v332, 1
  %v334 = vadd.f32 %v332, %v333
  %v339 = vsel %vm274, %v316, %v307
  %v340 = vsel %vm276, %v325, %v339
  %v341 = vsel %vm278, %v334, %v340
  %343 = vst.msk [vmem:[%s3] sm:$0xf] %vm281, %v341
  // Predicated region
  $region10: #{tpu_custom_call.1} parent=0 // pred_check
    _
  $region11: #{tpu_custom_call.1} parent=0 // pred_check_branch
    %345 = sbr.rel (0) target = $region13
  $region12: #{tpu_custom_call.1} parent=0 // pred_region
    _
  $region13: #{tpu_custom_call.1} parent=0 // pred_fallthru
    _
  // Predicated region
  $region14: #{tpu_custom_call.1} parent=0 // pred_check
    _
  $region15: #{tpu_custom_call.1} parent=0 // pred_check_branch
    %347 = sbr.rel (0) target = $region17
  $region16: #{tpu_custom_call.1} parent=0 // pred_region
    _
  $region17: #{tpu_custom_call.1} parent=0 // pred_fallthru
    _
  // Predicated region
  $region18: #{tpu_custom_call.1} parent=0 // pred_check
    _
  $region19: #{tpu_custom_call.1} parent=0 // pred_check_branch
    %349 = sbr.rel (0) target = $region21
  $region20: #{tpu_custom_call.1} parent=0 // pred_region
    _
  $region21: #{tpu_custom_call.1} parent=0 // pred_fallthru
    _
  // Predicated region
  $region22: #{tpu_custom_call.1} parent=0 // pred_check
    _
  $region23: #{tpu_custom_call.1} parent=0 // pred_check_branch
    %351 = sbr.rel (0) target = $region25
  $region24: #{tpu_custom_call.1} parent=0 // pred_region
    _
  $region25: #{tpu_custom_call.1} parent=0 // pred_fallthru
    _

</llo_original>
